<compile_context>
chip_gen: v6e
topology: v6e:2x2x1
jax: 0.10.0
libtpu: 0.0.40
codegen_flags: <defaults>
</compile_context>

<pallas_src>
import functools

import jax
import jax.numpy as jnp
from jax import lax
from jax.experimental import pallas as pl
from jax.experimental.pallas import tpu as pltpu


def _round_up(x, m):
    return ((x + m - 1) // m) * m


# ---------------------------------------------------------------------------
# Kernel
# ---------------------------------------------------------------------------
def _make_kernel(S, Kp, Hp, Op):
    """Build the fused MLP kernel for padded dims (all multiples of 128)."""
    c_w1 = 0            # [Kp, 2*Hp]  first layer (dyn | rew), biases folded
    c_w2 = 2 * Hp       # [Hp, Hp]    second dynamics layer
    c_w3 = c_w2 + Hp    # [Hp, Op]    final dynamics layer -> out cols [0:S)
    c_wr = c_w3 + Op    # [Hp, Op]    final reward layer   -> out col  S

    def kernel(xp_ref, w_ref, out_ref):
        xp = xp_ref[...]                                   # [Bp, Kp]

        # Layer 1 (dynamics + reward heads fused along the output axis).
        w1 = w_ref[0:Kp, c_w1:c_w2]                        # [Kp, 2*Hp]
        h1 = jnp.maximum(
            jnp.dot(xp, w1, preferred_element_type=jnp.float32), 0.0)
        h1d = h1[:, 0:Hp]                                  # dynamics hidden (padded)
        h1r = h1[:, Hp:2 * Hp]                             # reward hidden (padded)

        # Layer 2 (dynamics only).
        w2 = w_ref[0:Hp, c_w2:c_w3]
        h2 = jnp.maximum(
            jnp.dot(h1d, w2, preferred_element_type=jnp.float32), 0.0)

        # Final layers: two MXU pushes accumulating into one lane-dense slab.
        w3 = w_ref[0:Hp, c_w3:c_wr]
        wr = w_ref[0:Hp, c_wr:c_wr + Op]
        out = (jnp.dot(h2, w3, preferred_element_type=jnp.float32)
               + jnp.dot(h1r, wr, preferred_element_type=jnp.float32))

        # Residual add: out[:, 0:S] += state (state == xp cols 0:S); the
        # reward column and padding lanes get +0.
        col = lax.broadcasted_iota(jnp.int32, out.shape, 1)
        out_ref[...] = out + jnp.where(col < S, xp[:, 0:Op], 0.0)

    return kernel


# ---------------------------------------------------------------------------
# Wrapper-side packing (done once per parameter set)
# ---------------------------------------------------------------------------
def pack_params(params, state_dim, action_dim, hidden_dim):
    """Pack all weights/biases into one lane-dense [R, 3*Hp + 2*Op] f32 slab."""
    S, A, H = state_dim, action_dim, hidden_dim
    IN = S + A
    Kp = _round_up(IN + 1, 128)   # xp lane width (incl. bias-ones column)
    Hp = _round_up(H + 1, 128)    # hidden slab width (incl. bias-ones column)
    Op = _round_up(S + 1, 128)    # output slab width (next_state | reward)
    R = max(Kp, Hp)
    W_total = 2 * Hp + Hp + 2 * Op

    w = jnp.zeros((R, W_total), jnp.float32)

    # Layer 1, dynamics head (cols 0:Hp) and reward head (cols Hp:2*Hp).
    w = w.at[0:IN, 0:H].set(params["w1d"])
    w = w.at[IN, 0:H].set(params["b1d"][0])
    w = w.at[IN, H].set(1.0)                    # ones column -> layer-2 bias
    w = w.at[0:IN, Hp:Hp + H].set(params["w1r"])
    w = w.at[IN, Hp:Hp + H].set(params["b1r"][0])
    w = w.at[IN, Hp + H].set(1.0)               # ones column -> reward bias

    # Layer 2 (dynamics).
    c2 = 2 * Hp
    w = w.at[0:H, c2:c2 + H].set(params["w2d"])
    w = w.at[H, c2:c2 + H].set(params["b2d"][0])
    w = w.at[H, c2 + H].set(1.0)                # ones column -> layer-3 bias

    # Final dynamics layer -> out cols [0:S).
    c3 = c2 + Hp
    w = w.at[0:H, c3:c3 + S].set(params["w3d"])
    w = w.at[H, c3:c3 + S].set(params["b3d"][0])

    # Final reward layer -> out col S.
    cr = c3 + Op
    w = w.at[0:H, cr + S].set(params["w2r"][:, 0])
    w = w.at[H, cr + S].set(params["b2r"][0, 0])

    dims = (S, A, H, Kp, Hp, Op)
    return w, dims


# ---------------------------------------------------------------------------
# Forward
# ---------------------------------------------------------------------------
def dynamics_model_forward(state, action, packed_w, dims):
    """Pallas-backed equivalent of DynamicsModel.forward(state, action)."""
    S, A, H, Kp, Hp, Op = dims
    B = state.shape[0]
    Bp = _round_up(max(B, 1), 8)

    # Lane-dense input slab: [state | action | 1 | 0-pad], padded batch rows = 0.
    xp = jnp.zeros((Bp, Kp), jnp.float32)
    xp = xp.at[0:B, 0:S].set(state.astype(jnp.float32))
    xp = xp.at[0:B, S:S + A].set(action.astype(jnp.float32))
    xp = xp.at[0:B, S + A].set(1.0)

    flops = 2 * Bp * (2 * Kp * Hp + Hp * Hp + 2 * Hp * Op)
    bytes_accessed = 4 * (Bp * Kp + packed_w.size + Bp * Op)

    out = pl.pallas_call(
        _make_kernel(S, Kp, Hp, Op),
        out_shape=jax.ShapeDtypeStruct((Bp, Op), jnp.float32),
        in_specs=[
            pl.BlockSpec(memory_space=pltpu.VMEM),   # xp
            pl.BlockSpec(memory_space=pltpu.VMEM),   # packed weights
        ],
        out_specs=pl.BlockSpec(memory_space=pltpu.VMEM),
        cost_estimate=pl.CostEstimate(
            flops=flops, transcendentals=0, bytes_accessed=bytes_accessed),
    )(xp, packed_w)

    next_state = out[0:B, 0:S]
    reward = out[0:B, S:S + 1]
    return next_state, reward


# ---------------------------------------------------------------------------
# Param init (PyTorch-layout-equivalent) and pure-JAX reference
# ---------------------------------------------------------------------------
def init_params(key, state_dim, action_dim, hidden_dim):
    """Deterministic synthetic init. Weights stored [in, out]; bias [1, out]."""
    in_dim = state_dim + action_dim
    shapes = {
        "w1d": (in_dim, hidden_dim), "b1d": (1, hidden_dim),
        "w2d": (hidden_dim, hidden_dim), "b2d": (1, hidden_dim),
        "w3d": (hidden_dim, state_dim), "b3d": (1, state_dim),
        "w1r": (in_dim, hidden_dim), "b1r": (1, hidden_dim),
        "w2r": (hidden_dim, 1), "b2r": (1, 1),
    }
    params = {}
    for name, shape in shapes.items():
        key, sub = jax.random.split(key)
        fan_in = shape[0] if name.startswith("w") else shape[1]
        scale = 1.0 / jnp.sqrt(jnp.float32(max(fan_in, 1)))
        params[name] = (jax.random.uniform(sub, shape, jnp.float32,
                                           minval=-1.0, maxval=1.0) * scale)
    return params


def reference_forward(state, action, params):
    """Plain-JAX reference for correctness checking."""
    x = jnp.concatenate([state, action], axis=-1)
    h = jnp.maximum(x @ params["w1d"] + params["b1d"], 0.0)
    h = jnp.maximum(h @ params["w2d"] + params["b2d"], 0.0)
    delta = h @ params["w3d"] + params["b3d"]
    next_state = state + delta
    r = jnp.maximum(x @ params["w1r"] + params["b1r"], 0.0)
    reward = r @ params["w2r"] + params["b2r"]
    return next_state, reward


if __name__ == "__main__":
    state_dim, action_dim, hidden_dim = 8, 4, 32
    batch = 8

    key = jax.random.PRNGKey(0)
    kp, ks, ka = jax.random.split(key, 3)
    params = init_params(kp, state_dim, action_dim, hidden_dim)
    state = jax.random.normal(ks, (batch, state_dim), jnp.float32)
    action = jax.random.normal(ka, (batch, action_dim), jnp.float32)

    # Pack weights once (wrapper-side); reuse across calls.
    packed_w, dims = pack_params(params, state_dim, action_dim, hidden_dim)
    packed_w = jax.device_put(packed_w)

    fwd = jax.jit(dynamics_model_forward, static_argnums=(3,))
    next_state, reward = fwd(state, action, packed_w, dims)
    jax.block_until_ready((next_state, reward))

    ref_ns, ref_r = reference_forward(state, action, params)
    assert next_state.shape == (batch, state_dim)
    assert reward.shape == (batch, 1)
    assert jnp.allclose(next_state, ref_ns, atol=1e-4, rtol=1e-4)
    assert jnp.allclose(reward, ref_r, atol=1e-4, rtol=1e-4)

    print("KERNEL_OK")
</pallas_src>

<mosaic_0001>
module attributes {stable_mosaic.version = 11 : i64} {
  func.func @kernel(%arg0: memref<8x128xf32, #tpu.memory_space<vmem>>, %arg1: memref<128x640xf32, #tpu.memory_space<vmem>>, %arg2: memref<8x128xf32, #tpu.memory_space<vmem>>) attributes {dimension_semantics = [], scalar_prefetch = 0 : i64, scratch_operands = 0 : i64, tpu.core_type = #tpu.core_type<tc>} {
    %c0 = arith.constant 0 : index
    %c0_0 = arith.constant 0 : index
    %0 = vector.load %arg0[%c0, %c0_0] : memref<8x128xf32, #tpu.memory_space<vmem>>, vector<8x128xf32>
    %c0_1 = arith.constant 0 : index
    %c0_2 = arith.constant 0 : index
    %1 = vector.load %arg1[%c0_1, %c0_2] : memref<128x640xf32, #tpu.memory_space<vmem>>, vector<128x256xf32>
    %cst = arith.constant dense<0.000000e+00> : vector<8x256xf32>
    %2 = tpu.matmul %0, %1, %cst {dimension_numbers = #tpu.dot_dimension_numbers<[1], [0], [0], [1], [0, 0, 1, 1], [], []>} : vector<8x128xf32>, vector<128x256xf32>, vector<8x256xf32> -> vector<8x256xf32>
    %cst_3 = arith.constant 0.000000e+00 : f32
    %3 = vector.broadcast %cst_3 : f32 to vector<8x256xf32>
    %4 = arith.maximumf %2, %3 : vector<8x256xf32>
    %5 = vector.extract_strided_slice %4 {offsets = [0, 0], sizes = [8, 128], strides = [1, 1]} : vector<8x256xf32> to vector<8x128xf32>
    %6 = vector.extract_strided_slice %4 {offsets = [0, 128], sizes = [8, 128], strides = [1, 1]} : vector<8x256xf32> to vector<8x128xf32>
    %c0_4 = arith.constant 0 : index
    %c256 = arith.constant 256 : index
    %7 = vector.load %arg1[%c0_4, %c256] : memref<128x640xf32, #tpu.memory_space<vmem>>, vector<128x128xf32>
    %cst_5 = arith.constant dense<0.000000e+00> : vector<8x128xf32>
    %8 = tpu.matmul %5, %7, %cst_5 {dimension_numbers = #tpu.dot_dimension_numbers<[1], [0], [0], [1], [0, 0, 1, 1], [], []>} : vector<8x128xf32>, vector<128x128xf32>, vector<8x128xf32> -> vector<8x128xf32>
    %cst_6 = arith.constant 0.000000e+00 : f32
    %9 = vector.broadcast %cst_6 : f32 to vector<8x128xf32>
    %10 = arith.maximumf %8, %9 : vector<8x128xf32>
    %c0_7 = arith.constant 0 : index
    %c384 = arith.constant 384 : index
    %11 = vector.load %arg1[%c0_7, %c384] : memref<128x640xf32, #tpu.memory_space<vmem>>, vector<128x128xf32>
    %c0_8 = arith.constant 0 : index
    %c512 = arith.constant 512 : index
    %12 = vector.load %arg1[%c0_8, %c512] : memref<128x640xf32, #tpu.memory_space<vmem>>, vector<128x128xf32>
    %cst_9 = arith.constant dense<0.000000e+00> : vector<8x128xf32>
    %13 = tpu.matmul %10, %11, %cst_9 {dimension_numbers = #tpu.dot_dimension_numbers<[1], [0], [0], [1], [0, 0, 1, 1], [], []>} : vector<8x128xf32>, vector<128x128xf32>, vector<8x128xf32> -> vector<8x128xf32>
    %cst_10 = arith.constant dense<0.000000e+00> : vector<8x128xf32>
    %14 = tpu.matmul %6, %12, %cst_10 {dimension_numbers = #tpu.dot_dimension_numbers<[1], [0], [0], [1], [0, 0, 1, 1], [], []>} : vector<8x128xf32>, vector<128x128xf32>, vector<8x128xf32> -> vector<8x128xf32>
    %15 = arith.addf %13, %14 : vector<8x128xf32>
    %16 = tpu.iota {dimensions = array<i32: 1>} : vector<8x128xi32>
    %c8_i32 = arith.constant 8 : i32
    %17 = vector.broadcast %c8_i32 : i32 to vector<8x128xi32>
    %18 = arith.cmpi slt, %16, %17 : vector<8x128xi32>
    %cst_11 = arith.constant 0.000000e+00 : f32
    %19 = vector.broadcast %cst_11 : f32 to vector<8x128xf32>
    %20 = arith.select %18, %0, %19 : vector<8x128xi1>, vector<8x128xf32>
    %21 = arith.addf %15, %20 : vector<8x128xf32>
    %c0_12 = arith.constant 0 : index
    %c0_13 = arith.constant 0 : index
    %22 = vector.load %arg2[%c0_12, %c0_13] : memref<8x128xf32, #tpu.memory_space<vmem>>, vector<8x128xf32>
    tpu.vector_store %arg2[%c0_12, %c0_13], %21 {strides = array<i32>} : memref<8x128xf32, #tpu.memory_space<vmem>>, vector<8x128xf32>,
    return
  }
}

</mosaic_0001>

<llo_original>
// kernel: dynamics_model_forward.1
$region0: #{dynamics_model_forward.1}
  #allocation0 [shape = 'u32[]', space=smem, size = 0x4, offset = 0x4, fixed_abs, tag = 'smem constant byte address 0x4 - core index']
  #allocation1 [shape = 'u32[144,128]{1,0:T(1,128)}', space=vmem, size = 0x12000, scoped, tag = 'internal scratch']
  %s0 = inlined_call_operand.vmem [shape: f32[8,128], index: 0, kind: input, shape index: {}]
  %s1 = inlined_call_operand.hbm [shape: f32[128,640], index: 1, kind: input, shape index: {}]
  %s2 = inlined_call_operand.vmem [shape: f32[8,128], index: 2, kind: output, shape index: {}]
  %s3 = sld [smem:[#allocation0]]
  $region22: #{dynamics_model_forward.1} parent=0
    _
  %s5 = ssub.s32 1, %s3
  %s6 = scalar_select 0, %s5, %s3
  $region1: #{dynamics_model_forward.1} parent=0
    #allocation2 [shape = 'u8[327680]{0}', space=vmem, size = 0x50000, scoped, tag = 'input window, operand 1, single buffered']
    #allocation3 [shape = 's32[1]{0}', space=sflag, size = 0x4, scoped, tag = 'scoped memory for dynamics_model_forward.1']
    %7 = vsyncpa [#allocation3], 0
    // Predicated region
    $region2: #{dynamics_model_forward.1} parent=1 // pred_check
      _
    $region3: #{dynamics_model_forward.1} parent=1 // pred_check_branch
      %9 = sbr.rel (0) target = $region5
    $region4: #{dynamics_model_forward.1} parent=1 // pred_region
      _
    $region5: #{dynamics_model_forward.1} parent=1 // pred_fallthru
      _
    // Predicated region
    $region6: #{dynamics_model_forward.1} parent=1 // pred_check
      _
    $region7: #{dynamics_model_forward.1} parent=1 // pred_check_branch
      %11 = sbr.rel (0) target = $region9
    $region8: #{dynamics_model_forward.1} parent=1 // pred_region
      %s13 = ssub.s32 10240, 10240
      %14 = vsyncadd [#allocation3], %s13
      %s15 = sshll.u32 [#allocation2], 4
      %s16 = int_to_ptr.vmem [resolvable:$true] %s15
      %21 = dma.hbm_to_vmem [thread:$0]  %s1, 10240, %s16, [#allocation3], 640, 640, 40
    $region9: #{dynamics_model_forward.1} parent=1 // pred_fallthru
      _
    // Predicated region
    $region10: #{dynamics_model_forward.1} parent=1 // pred_check
      _
    $region11: #{dynamics_model_forward.1} parent=1 // pred_check_branch
      %23 = sbr.rel (0) target = $region13
    $region12: #{dynamics_model_forward.1} parent=1 // pred_region
      %24 = dma.done [#allocation3], 10240
    $region13: #{dynamics_model_forward.1} parent=1 // pred_fallthru
      _
    %v25 = vld [vmem:[%s0] sm:$0xff]
    %v26 = vld [vmem:[#allocation2] sm:$0xff]
    %v27 = vld [vmem:[#allocation2 + $0x8] sm:$0xff]
    %v28 = vld [vmem:[#allocation2 + $0x28] sm:$0xff]
    %v29 = vld [vmem:[#allocation2 + $0x30] sm:$0xff]
    %v30 = vld [vmem:[#allocation2 + $0x50] sm:$0xff]
    %v31 = vld [vmem:[#allocation2 + $0x58] sm:$0xff]
    %v32 = vld [vmem:[#allocation2 + $0x78] sm:$0xff]
    %v33 = vld [vmem:[#allocation2 + $0x80] sm:$0xff]
    %v34 = vld [vmem:[#allocation2 + $0xa0] sm:$0xff]
    %v35 = vld [vmem:[#allocation2 + $0xa8] sm:$0xff]
    %v36 = vld [vmem:[#allocation2 + $0xc8] sm:$0xff]
    %v37 = vld [vmem:[#allocation2 + $0xd0] sm:$0xff]
    %v38 = vld [vmem:[#allocation2 + $0xf0] sm:$0xff]
    %v39 = vld [vmem:[#allocation2 + $0xf8] sm:$0xff]
    %v40 = vld [vmem:[#allocation2 + $0x118] sm:$0xff]
    %v41 = vld [vmem:[#allocation2 + $0x120] sm:$0xff]
    %v42 = vld [vmem:[#allocation2 + $0x140] sm:$0xff]
    %v43 = vld [vmem:[#allocation2 + $0x148] sm:$0xff]
    %v44 = vld [vmem:[#allocation2 + $0x168] sm:$0xff]
    %v45 = vld [vmem:[#allocation2 + $0x170] sm:$0xff]
    %v46 = vld [vmem:[#allocation2 + $0x190] sm:$0xff]
    %v47 = vld [vmem:[#allocation2 + $0x198] sm:$0xff]
    %v48 = vld [vmem:[#allocation2 + $0x1b8] sm:$0xff]
    %v49 = vld [vmem:[#allocation2 + $0x1c0] sm:$0xff]
    %v50 = vld [vmem:[#allocation2 + $0x1e0] sm:$0xff]
    %v51 = vld [vmem:[#allocation2 + $0x1e8] sm:$0xff]
    %v52 = vld [vmem:[#allocation2 + $0x208] sm:$0xff]
    %v53 = vld [vmem:[#allocation2 + $0x210] sm:$0xff]
    %v54 = vld [vmem:[#allocation2 + $0x230] sm:$0xff]
    %v55 = vld [vmem:[#allocation2 + $0x238] sm:$0xff]
    %v56 = vld [vmem:[#allocation2 + $0x258] sm:$0xff]
    %v57 = vld [vmem:[#allocation2 + $0x260] sm:$0xff]
    %58 = vmatprep.subr.mxu0 %v57
    %59 = vmatpush1.msra.mxu0 %v56
    %60 = vmatprep.subr.mxu0 %v55
    %61 = vmatpush1.msra.mxu0 %v54
    %62 = vmatprep.subr.mxu0 %v53
    %63 = vmatpush1.msra.mxu0 %v52
    %64 = vmatprep.subr.mxu0 %v51
    %65 = vmatpush1.msra.mxu0 %v50
    %66 = vmatprep.subr.mxu0 %v49
    %67 = vmatpush1.msra.mxu0 %v48
    %68 = vmatprep.subr.mxu0 %v47
    %69 = vmatpush1.msra.mxu0 %v46
    %70 = vmatprep.subr.mxu0 %v45
    %71 = vmatpush1.msra.mxu0 %v44
    %72 = vmatprep.subr.mxu0 %v43
    %73 = vmatpush1.msra.mxu0 %v42
    %74 = vmatprep.subr.mxu0 %v41
    %75 = vmatpush1.msra.mxu0 %v40
    %76 = vmatprep.subr.mxu0 %v39
    %77 = vmatpush1.msra.mxu0 %v38
    %78 = vmatprep.subr.mxu0 %v37
    %79 = vmatpush1.msra.mxu0 %v36
    %80 = vmatprep.subr.mxu0 %v35
    %81 = vmatpush1.msra.mxu0 %v34
    %82 = vmatprep.subr.mxu0 %v33
    %83 = vmatpush1.msra.mxu0 %v32
    %84 = vmatprep.subr.mxu0 %v31
    %85 = vmatpush1.msra.mxu0 %v30
    %86 = vmatprep.subr.mxu0 %v29
    %87 = vmatpush1.msra.mxu0 %v28
    %88 = vmatprep.subr.mxu0 %v27
    %89 = vmatpush1.msra.mxu0 %v26
    %90 = vmatprep.subr.mxu0 0.0
    %91 = vmatpush2.msra.mxu0 0.0
    %92 = vmatprep.subr.mxu0 0.0
    %93 = vmatpush2.msra.mxu0 0.0
    %94 = vmatprep.subr.mxu0 0.0
    %95 = vmatpush2.msra.mxu0 0.0
    %96 = vmatprep.subr.mxu0 0.0
    %97 = vmatpush2.msra.mxu0 0.0
    %98 = vmatprep.subr.mxu0 0.0
    %99 = vmatpush2.msra.mxu0 0.0
    %100 = vmatprep.subr.mxu0 0.0
    %101 = vmatpush2.msra.mxu0 0.0
    %102 = vmatprep.subr.mxu0 0.0
    %103 = vmatpush2.msra.mxu0 0.0
    %104 = vmatprep.subr.mxu0 0.0
    %105 = vmatpush2.msra.mxu0 0.0
    %106 = vmatprep.subr.mxu0 0.0
    %107 = vmatpush2.msra.mxu0 0.0
    %108 = vmatprep.subr.mxu0 0.0
    %109 = vmatpush2.msra.mxu0 0.0
    %110 = vmatprep.subr.mxu0 0.0
    %111 = vmatpush2.msra.mxu0 0.0
    %112 = vmatprep.subr.mxu0 0.0
    %113 = vmatpush2.msra.mxu0 0.0
    %114 = vmatprep.subr.mxu0 0.0
    %115 = vmatpush2.msra.mxu0 0.0
    %116 = vmatprep.subr.mxu0 0.0
    %117 = vmatpush2.msra.mxu0 0.0
    %118 = vmatprep.subr.mxu0 0.0
    %119 = vmatpush2.msra.mxu0 0.0
    %120 = vmatprep.subr.mxu0 0.0
    %121 = vmatpush2.msra.mxu0 0.0
    %122 = vmatprep.mubr.f32.mxu0 0.0
    %123 = vmatmul.mubr.f32.gmra.mxu0 %v25
    %v124 = vpop.f32.mrf.mxu0
    %v125 = vadd.f32 0.0, %v124
    %v126 = vpop.f32.mrf.mxu0
    %v127 = vadd.f32 0.0, %v126
    %128 = vdwg.mxu0
    %v129 = vmax.f32 %v125, 0.0
    %v130 = vmax.f32 %v127, 0.0
    %v131 = vld [vmem:[#allocation2 + $0x10] sm:$0xff]
    %v132 = vld [vmem:[#allocation2 + $0x38] sm:$0xff]
    %v133 = vld [vmem:[#allocation2 + $0x60] sm:$0xff]
    %v134 = vld [vmem:[#allocation2 + $0x88] sm:$0xff]
    %v135 = vld [vmem:[#allocation2 + $0xb0] sm:$0xff]
    %v136 = vld [vmem:[#allocation2 + $0xd8] sm:$0xff]
    %v137 = vld [vmem:[#allocation2 + $0x100] sm:$0xff]
    %v138 = vld [vmem:[#allocation2 + $0x128] sm:$0xff]
    %v139 = vld [vmem:[#allocation2 + $0x150] sm:$0xff]
    %v140 = vld [vmem:[#allocation2 + $0x178] sm:$0xff]
    %v141 = vld [vmem:[#allocation2 + $0x1a0] sm:$0xff]
    %v142 = vld [vmem:[#allocation2 + $0x1c8] sm:$0xff]
    %v143 = vld [vmem:[#allocation2 + $0x1f0] sm:$0xff]
    %v144 = vld [vmem:[#allocation2 + $0x218] sm:$0xff]
    %v145 = vld [vmem:[#allocation2 + $0x240] sm:$0xff]
    %v146 = vld [vmem:[#allocation2 + $0x268] sm:$0xff]
    %147 = vmatprep.subr.mxu0 0.0
    %148 = vmatpush1.msra.mxu0 %v146
    %149 = vmatprep.subr.mxu0 0.0
    %150 = vmatpush1.msra.mxu0 %v145
    %151 = vmatprep.subr.mxu0 0.0
    %152 = vmatpush1.msra.mxu0 %v144
    %153 = vmatprep.subr.mxu0 0.0
    %154 = vmatpush1.msra.mxu0 %v143
    %155 = vmatprep.subr.mxu0 0.0
    %156 = vmatpush1.msra.mxu0 %v142
    %157 = vmatprep.subr.mxu0 0.0
    %158 = vmatpush1.msra.mxu0 %v141
    %159 = vmatprep.subr.mxu0 0.0
    %160 = vmatpush1.msra.mxu0 %v140
    %161 = vmatprep.subr.mxu0 0.0
    %162 = vmatpush1.msra.mxu0 %v139
    %163 = vmatprep.subr.mxu0 0.0
    %164 = vmatpush1.msra.mxu0 %v138
    %165 = vmatprep.subr.mxu0 0.0
    %166 = vmatpush1.msra.mxu0 %v137
    %167 = vmatprep.subr.mxu0 0.0
    %168 = vmatpush1.msra.mxu0 %v136
    %169 = vmatprep.subr.mxu0 0.0
    %170 = vmatpush1.msra.mxu0 %v135
    %171 = vmatprep.subr.mxu0 0.0
    %172 = vmatpush1.msra.mxu0 %v134
    %173 = vmatprep.subr.mxu0 0.0
    %174 = vmatpush1.msra.mxu0 %v133
    %175 = vmatprep.subr.mxu0 0.0
    %176 = vmatpush1.msra.mxu0 %v132
    %177 = vmatprep.subr.mxu0 0.0
    %178 = vmatpush1.msra.mxu0 %v131
    %179 = vmatprep.subr.mxu0 0.0
    %180 = vmatpush2.msra.mxu0 0.0
    %181 = vmatprep.subr.mxu0 0.0
    %182 = vmatpush2.msra.mxu0 0.0
    %183 = vmatprep.subr.mxu0 0.0
    %184 = vmatpush2.msra.mxu0 0.0
    %185 = vmatprep.subr.mxu0 0.0
    %186 = vmatpush2.msra.mxu0 0.0
    %187 = vmatprep.subr.mxu0 0.0
    %188 = vmatpush2.msra.mxu0 0.0
    %189 = vmatprep.subr.mxu0 0.0
    %190 = vmatpush2.msra.mxu0 0.0
    %191 = vmatprep.subr.mxu0 0.0
    %192 = vmatpush2.msra.mxu0 0.0
    %193 = vmatprep.subr.mxu0 0.0
    %194 = vmatpush2.msra.mxu0 0.0
    %195 = vmatprep.subr.mxu0 0.0
    %196 = vmatpush2.msra.mxu0 0.0
    %197 = vmatprep.subr.mxu0 0.0
    %198 = vmatpush2.msra.mxu0 0.0
    %199 = vmatprep.subr.mxu0 0.0
    %200 = vmatpush2.msra.mxu0 0.0
    %201 = vmatprep.subr.mxu0 0.0
    %202 = vmatpush2.msra.mxu0 0.0
    %203 = vmatprep.subr.mxu0 0.0
    %204 = vmatpush2.msra.mxu0 0.0
    %205 = vmatprep.subr.mxu0 0.0
    %206 = vmatpush2.msra.mxu0 0.0
    %207 = vmatprep.subr.mxu0 0.0
    %208 = vmatpush2.msra.mxu0 0.0
    %209 = vmatprep.subr.mxu0 0.0
    %210 = vmatpush2.msra.mxu0 0.0
    %211 = vmatprep.mubr.f32.mxu0 0.0
    %212 = vmatmul.mubr.f32.gmra.mxu0 %v129
    %v213 = vpop.f32.mrf.mxu0
    %v214 = vadd.f32 0.0, %v213
    %v215 = vpop.f32.mrf.mxu0
    %216 = vdwg.mxu0
    %v217 = vmax.f32 %v214, 0.0
    %v218 = vld [vmem:[#allocation2 + $0x18] sm:$0xff]
    %v219 = vld [vmem:[#allocation2 + $0x40] sm:$0xff]
    %v220 = vld [vmem:[#allocation2 + $0x68] sm:$0xff]
    %v221 = vld [vmem:[#allocation2 + $0x90] sm:$0xff]
    %v222 = vld [vmem:[#allocation2 + $0xb8] sm:$0xff]
    %v223 = vld [vmem:[#allocation2 + $0xe0] sm:$0xff]
    %v224 = vld [vmem:[#allocation2 + $0x108] sm:$0xff]
    %v225 = vld [vmem:[#allocation2 + $0x130] sm:$0xff]
    %v226 = vld [vmem:[#allocation2 + $0x158] sm:$0xff]
    %v227 = vld [vmem:[#allocation2 + $0x180] sm:$0xff]
    %v228 = vld [vmem:[#allocation2 + $0x1a8] sm:$0xff]
    %v229 = vld [vmem:[#allocation2 + $0x1d0] sm:$0xff]
    %v230 = vld [vmem:[#allocation2 + $0x1f8] sm:$0xff]
    %v231 = vld [vmem:[#allocation2 + $0x220] sm:$0xff]
    %v232 = vld [vmem:[#allocation2 + $0x248] sm:$0xff]
    %v233 = vld [vmem:[#allocation2 + $0x270] sm:$0xff]
    %v234 = vld [vmem:[#allocation2 + $0x20] sm:$0xff]
    %v235 = vld [vmem:[#allocation2 + $0x48] sm:$0xff]
    %v236 = vld [vmem:[#allocation2 + $0x70] sm:$0xff]
    %v237 = vld [vmem:[#allocation2 + $0x98] sm:$0xff]
    %v238 = vld [vmem:[#allocation2 + $0xc0] sm:$0xff]
    %v239 = vld [vmem:[#allocation2 + $0xe8] sm:$0xff]
    %v240 = vld [vmem:[#allocation2 + $0x110] sm:$0xff]
    %v241 = vld [vmem:[#allocation2 + $0x138] sm:$0xff]
    %v242 = vld [vmem:[#allocation2 + $0x160] sm:$0xff]
    %v243 = vld [vmem:[#allocation2 + $0x188] sm:$0xff]
    %v244 = vld [vmem:[#allocation2 + $0x1b0] sm:$0xff]
    %v245 = vld [vmem:[#allocation2 + $0x1d8] sm:$0xff]
    %v246 = vld [vmem:[#allocation2 + $0x200] sm:$0xff]
    %v247 = vld [vmem:[#allocation2 + $0x228] sm:$0xff]
    %v248 = vld [vmem:[#allocation2 + $0x250] sm:$0xff]
    %v249 = vld [vmem:[#allocation2 + $0x278] sm:$0xff]
    %250 = vmatprep.subr.mxu0 0.0
    %251 = vmatpush1.msra.mxu0 %v249
    %252 = vmatprep.subr.mxu0 0.0
    %253 = vmatpush1.msra.mxu0 %v248
    %254 = vmatprep.subr.mxu0 0.0
    %255 = vmatpush1.msra.mxu0 %v247
    %256 = vmatprep.subr.mxu0 0.0
    %257 = vmatpush1.msra.mxu0 %v246
    %258 = vmatprep.subr.mxu0 0.0
    %259 = vmatpush1.msra.mxu0 %v245
    %260 = vmatprep.subr.mxu0 0.0
    %261 = vmatpush1.msra.mxu0 %v244
    %262 = vmatprep.subr.mxu0 0.0
    %263 = vmatpush1.msra.mxu0 %v243
    %264 = vmatprep.subr.mxu0 0.0
    %265 = vmatpush1.msra.mxu0 %v242
    %266 = vmatprep.subr.mxu0 0.0
    %267 = vmatpush1.msra.mxu0 %v241
    %268 = vmatprep.subr.mxu0 0.0
    %269 = vmatpush1.msra.mxu0 %v240
    %270 = vmatprep.subr.mxu0 0.0
    %271 = vmatpush1.msra.mxu0 %v239
    %272 = vmatprep.subr.mxu0 0.0
    %273 = vmatpush1.msra.mxu0 %v238
    %274 = vmatprep.subr.mxu0 0.0
    %275 = vmatpush1.msra.mxu0 %v237
    %276 = vmatprep.subr.mxu0 0.0
    %277 = vmatpush1.msra.mxu0 %v236
    %278 = vmatprep.subr.mxu0 0.0
    %279 = vmatpush1.msra.mxu0 %v235
    %280 = vmatprep.subr.mxu0 0.0
    %281 = vmatpush1.msra.mxu0 %v234
    %282 = vmatprep.subr.mxu0 0.0
    %283 = vmatpush2.msra.mxu0 0.0
    %284 = vmatprep.subr.mxu0 0.0
    %285 = vmatpush2.msra.mxu0 0.0
    %286 = vmatprep.subr.mxu0 0.0
    %287 = vmatpush2.msra.mxu0 0.0
    %288 = vmatprep.subr.mxu0 0.0
    %289 = vmatpush2.msra.mxu0 0.0
    %290 = vmatprep.subr.mxu0 0.0
    %291 = vmatpush2.msra.mxu0 0.0
    %292 = vmatprep.subr.mxu0 0.0
    %293 = vmatpush2.msra.mxu0 0.0
    %294 = vmatprep.subr.mxu0 0.0
    %295 = vmatpush2.msra.mxu0 0.0
    %296 = vmatprep.subr.mxu0 0.0
    %297 = vmatpush2.msra.mxu0 0.0
    %298 = vmatprep.subr.mxu0 0.0
    %299 = vmatpush2.msra.mxu0 0.0
    %300 = vmatprep.subr.mxu0 0.0
    %301 = vmatpush2.msra.mxu0 0.0
    %302 = vmatprep.subr.mxu0 0.0
    %303 = vmatpush2.msra.mxu0 0.0
    %304 = vmatprep.subr.mxu0 0.0
    %305 = vmatpush2.msra.mxu0 0.0
    %306 = vmatprep.subr.mxu0 0.0
    %307 = vmatpush2.msra.mxu0 0.0
    %308 = vmatprep.subr.mxu0 0.0
    %309 = vmatpush2.msra.mxu0 0.0
    %310 = vmatprep.subr.mxu0 0.0
    %311 = vmatpush2.msra.mxu0 0.0
    %312 = vmatprep.subr.mxu0 0.0
    %313 = vmatpush2.msra.mxu0 0.0
    %314 = vmatprep.mubr.f32.mxu0 0.0
    %315 = vmatmul.mubr.f32.gmra.mxu0 %v130
    %v316 = vpop.f32.mrf.mxu0
    %v317 = vadd.f32 0.0, %v316
    %v318 = vpop.f32.mrf.mxu0
    %319 = vdwg.mxu0
    %320 = vmatprep.subr.mxu0 0.0
    %321 = vmatpush1.msra.mxu0 %v233
    %322 = vmatprep.subr.mxu0 0.0
    %323 = vmatpush1.msra.mxu0 %v232
    %324 = vmatprep.subr.mxu0 0.0
    %325 = vmatpush1.msra.mxu0 %v231
    %326 = vmatprep.subr.mxu0 0.0
    %327 = vmatpush1.msra.mxu0 %v230
    %328 = vmatprep.subr.mxu0 0.0
    %329 = vmatpush1.msra.mxu0 %v229
    %330 = vmatprep.subr.mxu0 0.0
    %331 = vmatpush1.msra.mxu0 %v228
    %332 = vmatprep.subr.mxu0 0.0
    %333 = vmatpush1.msra.mxu0 %v227
    %334 = vmatprep.subr.mxu0 0.0
    %335 = vmatpush1.msra.mxu0 %v226
    %336 = vmatprep.subr.mxu0 0.0
    %337 = vmatpush1.msra.mxu0 %v225
    %338 = vmatprep.subr.mxu0 0.0
    %339 = vmatpush1.msra.mxu0 %v224
    %340 = vmatprep.subr.mxu0 0.0
    %341 = vmatpush1.msra.mxu0 %v223
    %342 = vmatprep.subr.mxu0 0.0
    %343 = vmatpush1.msra.mxu0 %v222
    %344 = vmatprep.subr.mxu0 0.0
    %345 = vmatpush1.msra.mxu0 %v221
    %346 = vmatprep.subr.mxu0 0.0
    %347 = vmatpush1.msra.mxu0 %v220
    %348 = vmatprep.subr.mxu0 0.0
    %349 = vmatpush1.msra.mxu0 %v219
    %350 = vmatprep.subr.mxu0 0.0
    %351 = vmatpush1.msra.mxu0 %v218
    %352 = vmatprep.subr.mxu0 0.0
    %353 = vmatpush2.msra.mxu0 0.0
    %354 = vmatprep.subr.mxu0 0.0
    %355 = vmatpush2.msra.mxu0 0.0
    %356 = vmatprep.subr.mxu0 0.0
    %357 = vmatpush2.msra.mxu0 0.0
    %358 = vmatprep.subr.mxu0 0.0
    %359 = vmatpush2.msra.mxu0 0.0
    %360 = vmatprep.subr.mxu0 0.0
    %361 = vmatpush2.msra.mxu0 0.0
    %362 = vmatprep.subr.mxu0 0.0
    %363 = vmatpush2.msra.mxu0 0.0
    %364 = vmatprep.subr.mxu0 0.0
    %365 = vmatpush2.msra.mxu0 0.0
    %366 = vmatprep.subr.mxu0 0.0
    %367 = vmatpush2.msra.mxu0 0.0
    %368 = vmatprep.subr.mxu0 0.0
    %369 = vmatpush2.msra.mxu0 0.0
    %370 = vmatprep.subr.mxu0 0.0
    %371 = vmatpush2.msra.mxu0 0.0
    %372 = vmatprep.subr.mxu0 0.0
    %373 = vmatpush2.msra.mxu0 0.0
    %374 = vmatprep.subr.mxu0 0.0
    %375 = vmatpush2.msra.mxu0 0.0
    %376 = vmatprep.subr.mxu0 0.0
    %377 = vmatpush2.msra.mxu0 0.0
    %378 = vmatprep.subr.mxu0 0.0
    %379 = vmatpush2.msra.mxu0 0.0
    %380 = vmatprep.subr.mxu0 0.0
    %381 = vmatpush2.msra.mxu0 0.0
    %382 = vmatprep.subr.mxu0 0.0
    %383 = vmatpush2.msra.mxu0 0.0
    %384 = vmatprep.mubr.f32.mxu0 0.0
    %385 = vmatmul.mubr.f32.gmra.mxu0 %v217
    %v386 = vpop.f32.mrf.mxu0
    %v387 = vadd.f32 %v317, %v386
    %v388 = vpop.f32.mrf.mxu0
    %389 = vdwg.mxu0
    %v390 = vlaneseq
    %v391 = vand.u32 %v390, 127
    %vm392 = vcmp.lt.s32.totalorder %v391, 8
    %v393 = vsel %vm392, %v25, 0.0
    %v394 = vadd.f32 %v387, %v393
    %395 = vst [vmem:[%s2] sm:$0xff] %v394
    // Predicated region
    $region14: #{dynamics_model_forward.1} parent=1 // pred_check
      _
    $region15: #{dynamics_model_forward.1} parent=1 // pred_check_branch
      %397 = sbr.rel (0) target = $region17
    $region16: #{dynamics_model_forward.1} parent=1 // pred_region
      _
    $region17: #{dynamics_model_forward.1} parent=1 // pred_fallthru
      _
    // Predicated region
    $region18: #{dynamics_model_forward.1} parent=1 // pred_check
      _
    $region19: #{dynamics_model_forward.1} parent=1 // pred_check_branch
      %399 = sbr.rel (0) target = $region21
    $region20: #{dynamics_model_forward.1} parent=1 // pred_region
      _
    $region21: #{dynamics_model_forward.1} parent=1 // pred_fallthru
      _
    %400 = vsyncpa [#allocation3], 1

</llo_original>
